<compile_context>
chip_gen: v5e
topology: v5e:2x2
jax: 0.10.0
libtpu: 0.0.40
codegen_flags: <defaults>
</compile_context>

<pallas_src>
import math
import jax
import jax.numpy as jnp
from jax.experimental import pallas as pl
from jax.experimental.pallas import tpu as pltpu


def _attention_kernel(x_ref, w_ref, out_ref, attn_ref):
    # x_ref:    (TB, L, D) tile of batch rows
    # w_ref:    (1, D)     attention parameter, lane-dense row layout (shared)
    # out_ref:  (TB, D)    weighted-sum output tile
    # attn_ref: (TB, L)    attention-distribution output tile
    x = x_ref[...].astype(jnp.float32)           # (TB, L, D)
    w = w_ref[...].astype(jnp.float32)           # (1, D)  -- hoisted once per invocation

    # attn_score = x @ w  computed as a lane reduce over D (VPU mul + XLU reduce; no MXU).
    s = jnp.sum(x * w[None, :, :], axis=-1)      # (TB, L)

    # Numerically stable softmax over the sequence axis on a lane-dense (TB, L) slab.
    m = jnp.max(s, axis=-1, keepdims=True)       # (TB, 1)
    e = jnp.exp(s - m)                           # (TB, L)   (EUP exp)
    denom = jnp.sum(e, axis=-1, keepdims=True)   # (TB, 1)
    p = e * pl.reciprocal(denom, approx=True)    # (TB, L)   (EUP reciprocal, VPU idle otherwise)

    # weighted_sum = sum_L (x * p)  -> sublane reduce over the sequence axis.
    ws = jnp.sum(x * p[:, :, None], axis=1)      # (TB, D)

    out_ref[...] = ws.astype(out_ref.dtype)
    attn_ref[...] = p.astype(attn_ref.dtype)


def _pick_batch_tile(B, L, D, itemsize, target_tile_bytes=2 * 1024 * 1024):
    """Pick TB so the (double-buffered) x tile is ~1-4 MiB, TB a multiple of 8 when possible."""
    bytes_per_row = max(1, L * D * itemsize)
    tb = max(1, target_tile_bytes // bytes_per_row)
    tb = max(8, (tb // 8) * 8)        # full sublanes when batch is large enough
    if tb >= B:
        tb = B                        # small-batch case: one tile covers everything
    return tb


def attention_forward(x_in, attention_param):
    """x_in: (B, L, D); attention_param: (D, 1).
    Returns (attn_distrib [B, L], weighted_sum [B, D]) — the
    `return_attn_distribution=True` path of the PyTorch module."""
    B, L, D = x_in.shape
    itemsize = jnp.dtype(x_in.dtype).itemsize
    tb = _pick_batch_tile(B, L, D, itemsize)
    grid = (pl.cdiv(B, tb),)

    # Lane-dense (1, D) row layout for the parameter.
    w_row = attention_param.reshape(1, D)

    out_shapes = (
        jax.ShapeDtypeStruct((B, D), x_in.dtype),  # weighted_sum
        jax.ShapeDtypeStruct((B, L), x_in.dtype),  # attn_distrib
    )

    # Bandwidth-bound hint for XLA's scheduler.
    cost = pl.CostEstimate(
        flops=4 * B * L * D,
        transcendentals=B * L,
        bytes_accessed=B * L * D * itemsize + B * (L + D) * itemsize + D * itemsize,
    )

    weighted_sum, attn_distrib = pl.pallas_call(
        _attention_kernel,
        out_shape=out_shapes,
        grid_spec=pltpu.PrefetchScalarGridSpec(
            num_scalar_prefetch=0,
            grid=grid,
            in_specs=[
                pl.BlockSpec((tb, L, D), lambda i: (i, 0, 0)),  # TB batch rows per step
                pl.BlockSpec((1, D), lambda i: (0, 0)),         # shared parameter row
            ],
            out_specs=[
                pl.BlockSpec((tb, D), lambda i: (i, 0)),
                pl.BlockSpec((tb, L), lambda i: (i, 0)),
            ],
        ),
        compiler_params=pltpu.CompilerParams(
            dimension_semantics=("parallel",),          # shards batch tiles across v7x's 2 TCs
            vmem_limit_bytes=32 * 1024 * 1024,          # explicit; safe on v5e/v6e/v7x
        ),
        cost_estimate=cost,
    )(x_in, w_row)
    return attn_distrib, weighted_sum


def xavier_normal(key, shape):
    # Matches torch.nn.init.xavier_normal_ for a 2-D (attention_size, 1) tensor:
    # fan_out = shape[0], fan_in = shape[1] -> std = sqrt(2 / (fan_in + fan_out)).
    fan_out, fan_in = shape[0], shape[1]
    std = math.sqrt(2.0 / float(fan_in + fan_out))
    return std * jax.random.normal(key, shape, dtype=jnp.float32)


def reference_forward(x_in, w):
    s = jnp.einsum("bld,do->bl", x_in, w)
    p = jax.nn.softmax(s, axis=-1)
    ws = jnp.sum(x_in * p[..., None], axis=-2)
    return p, ws


if __name__ == "__main__":
    B, L, D = 2, 8, 32  # batch, seq_len, embedding_dim (attention_size = D)
    key = jax.random.PRNGKey(0)
    kx, kw = jax.random.split(key)
    x = jax.random.normal(kx, (B, L, D), dtype=jnp.float32)
    attention_param = xavier_normal(kw, (D, 1))

    attn_distrib, weighted_sum = attention_forward(x, attention_param)
    jax.block_until_ready((attn_distrib, weighted_sum))

    # Sanity check against a pure-JAX reference (tolerance accommodates the
    # EUP approx reciprocal used for the softmax denominator).
    p_ref, ws_ref = reference_forward(x, attention_param)
    assert jnp.allclose(attn_distrib, p_ref, atol=2e-3, rtol=2e-3), "attn mismatch"
    assert jnp.allclose(weighted_sum, ws_ref, atol=2e-3, rtol=2e-3), "weighted_sum mismatch"

    print("KERNEL_OK")
</pallas_src>

<mosaic_0001>
module attributes {stable_mosaic.version = 11 : i64} {
  func.func @_attention_kernel(%arg0: i32, %arg1: memref<2x8x32xf32, #tpu.memory_space<vmem>>, %arg2: memref<1x32xf32, #tpu.memory_space<vmem>>, %arg3: memref<2x32xf32, #tpu.memory_space<vmem>>, %arg4: memref<2x8xf32, #tpu.memory_space<vmem>>) attributes {dimension_semantics = [#tpu.dimension_semantics<parallel>], iteration_bounds = array<i64: 1>, scalar_prefetch = 0 : i64, scratch_operands = 0 : i64, tpu.core_type = #tpu.core_type<tc>, window_params = [{transform_indices = @transform_0, window_bounds = array<i64: 2, 8, 32>}, {pipeline_mode = #tpu.pipeline_mode<synchronous>, transform_indices = @transform_1, window_bounds = array<i64: 1, 32>}, {transform_indices = @transform_2, window_bounds = array<i64: 2, 32>}, {transform_indices = @transform_3, window_bounds = array<i64: 2, 8>}]} {
    %c0 = arith.constant 0 : index
    %c0_0 = arith.constant 0 : index
    %c0_1 = arith.constant 0 : index
    %0 = vector.load %arg1[%c0, %c0_0, %c0_1] : memref<2x8x32xf32, #tpu.memory_space<vmem>>, vector<2x8x32xf32>
    %c0_2 = arith.constant 0 : index
    %c0_3 = arith.constant 0 : index
    %1 = vector.load %arg2[%c0_2, %c0_3] : memref<1x32xf32, #tpu.memory_space<vmem>>, vector<1x32xf32>
    %2 = vector.shape_cast %1 : vector<1x32xf32> to vector<1x1x32xf32>
    %3 = vector.broadcast %2 : vector<1x1x32xf32> to vector<2x8x32xf32>
    %4 = arith.mulf %0, %3 : vector<2x8x32xf32>
    %cst = arith.constant dense<0.000000e+00> : vector<2x8xf32>
    %5 = vector.multi_reduction <add>, %4, %cst [2] : vector<2x8x32xf32> to vector<2x8xf32>
    %cst_4 = arith.constant dense<0xFF800000> : vector<2xf32>
    %6 = vector.multi_reduction <maximumf>, %5, %cst_4 [1] : vector<2x8xf32> to vector<2xf32>
    %7 = vector.shape_cast %6 : vector<2xf32> to vector<2x1xf32>
    %8 = vector.broadcast %7 : vector<2x1xf32> to vector<2x8xf32>
    %9 = arith.subf %5, %8 : vector<2x8xf32>
    %10 = math.exp %9 : vector<2x8xf32>
    %cst_5 = arith.constant dense<0.000000e+00> : vector<2xf32>
    %11 = vector.multi_reduction <add>, %10, %cst_5 [1] : vector<2x8xf32> to vector<2xf32>
    %12 = vector.shape_cast %11 : vector<2xf32> to vector<2x1xf32>
    %13 = tpu.reciprocal %12 {approx = true} : vector<2x1xf32> -> vector<2x1xf32>
    %14 = vector.broadcast %13 : vector<2x1xf32> to vector<2x8xf32>
    %15 = arith.mulf %10, %14 : vector<2x8xf32>
    %16 = vector.shape_cast %15 : vector<2x8xf32> to vector<2x8x1xf32>
    %17 = vector.broadcast %16 : vector<2x8x1xf32> to vector<2x8x32xf32>
    %18 = arith.mulf %0, %17 : vector<2x8x32xf32>
    %cst_6 = arith.constant dense<0.000000e+00> : vector<2x32xf32>
    %19 = vector.multi_reduction <add>, %18, %cst_6 [1] : vector<2x8x32xf32> to vector<2x32xf32>
    %c0_7 = arith.constant 0 : index
    %c0_8 = arith.constant 0 : index
    %20 = vector.load %arg3[%c0_7, %c0_8] : memref<2x32xf32, #tpu.memory_space<vmem>>, vector<2x32xf32>
    tpu.vector_store %arg3[%c0_7, %c0_8], %19 {strides = array<i32>} : memref<2x32xf32, #tpu.memory_space<vmem>>, vector<2x32xf32>,
    %c0_9 = arith.constant 0 : index
    %c0_10 = arith.constant 0 : index
    %21 = vector.load %arg4[%c0_9, %c0_10] : memref<2x8xf32, #tpu.memory_space<vmem>>, vector<2x8xf32>
    tpu.vector_store %arg4[%c0_9, %c0_10], %15 {strides = array<i32>} : memref<2x8xf32, #tpu.memory_space<vmem>>, vector<2x8xf32>,
    return
  }
  func.func @transform_0(%arg0: i32) -> (i32, i32, i32) {
    %c0_i32 = arith.constant 0 : i32
    %c0_i32_0 = arith.constant 0 : i32
    %c0_i32_1 = arith.constant 0 : i32
    return %arg0, %c0_i32, %c0_i32_0 : i32, i32, i32
  }
  func.func @transform_1(%arg0: i32) -> (i32, i32) {
    %c0_i32 = arith.constant 0 : i32
    %c0_i32_0 = arith.constant 0 : i32
    %c0_i32_1 = arith.constant 0 : i32
    return %c0_i32, %c0_i32_0 : i32, i32
  }
  func.func @transform_2(%arg0: i32) -> (i32, i32) {
    %c0_i32 = arith.constant 0 : i32
    %c0_i32_0 = arith.constant 0 : i32
    return %arg0, %c0_i32 : i32, i32
  }
  func.func @transform_3(%arg0: i32) -> (i32, i32) {
    %c0_i32 = arith.constant 0 : i32
    %c0_i32_0 = arith.constant 0 : i32
    return %arg0, %c0_i32 : i32, i32
  }
}

</mosaic_0001>

<llo_original>
// kernel: tpu_custom_call.1
$region0: #{tpu_custom_call.1}
  #allocation0 [shape = 'u32[]', space=smem, size = 0x4, offset = 0x4, fixed_abs, tag = 'smem constant byte address 0x4 - core index']
  #allocation1 [shape = 'u32[72,128]{1,0:T(1,128)}', space=vmem, size = 0x9000, scoped, tag = 'internal scratch']
  %s0 = inlined_call_operand.hbm [shape: f32[2,8,32], index: 0, kind: input, shape index: {}]
  %s1 = inlined_call_operand.hbm [shape: f32[1,32], index: 1, kind: input, shape index: {}]
  %s2 = inlined_call_operand.hbm [shape: f32[2,32], index: 2, kind: output, shape index: {0}]
  %s3 = inlined_call_operand.hbm [shape: f32[2,8], index: 3, kind: output, shape index: {1}]
  %4 = xla_tuple %s2, %s3
  %s5 = sld [smem:[#allocation0]]
  $region34: #{tpu_custom_call.1} parent=0
    _
  %s7 = ssub.s32 1, %s5
  %s8 = scalar_select 0, %s7, %s5
  $region1: #{tpu_custom_call.1} parent=0
    #allocation2 [shape = 'u8[8192]{0}', space=vmem, size = 0x2000, scoped, tag = 'input window, operand 0, single buffered']
    #allocation3 [shape = 's32[1]{0}', space=sflag, size = 0x4, scoped, tag = 'scoped memory for tpu_custom_call.1']
    #allocation4 [shape = 's32[1]{0}', space=sflag, size = 0x4, scoped, tag = 'scoped memory for tpu_custom_call.1']
    #allocation5 [shape = 'u8[512]{0}', space=vmem, size = 0x400, scoped, tag = 'input window, operand 1, single buffered']
    #allocation6 [shape = 's32[1]{0}', space=sflag, size = 0x4, scoped, tag = 'scoped memory for tpu_custom_call.1']
    #allocation7 [shape = 'u8[1024]{0}', space=vmem, size = 0x400, scoped, tag = 'output window, operand 0, single buffered']
    #allocation8 [shape = 'u8[1024]{0}', space=vmem, size = 0x400, scoped, tag = 'output window, operand 1, single buffered']
    #allocation9 [shape = 's32[1]{0}', space=sflag, size = 0x4, scoped, tag = 'scoped memory for tpu_custom_call.1']
    %9 = vsyncpa [#allocation3], 0
    %10 = vsyncpa [#allocation6], 0
    %11 = vsyncpa [#allocation4], 0
    %12 = vsyncpa [#allocation9], 0
    // Predicated region
    $region2: #{tpu_custom_call.1} parent=1 // pred_check
      _
    $region3: #{tpu_custom_call.1} parent=1 // pred_check_branch
      %14 = sbr.rel (0) target = $region5
    $region4: #{tpu_custom_call.1} parent=1 // pred_region
      %16 = vsyncadd [#allocation3], 0
      %s17 = sshll.u32 %s0, 4
      %s18 = int_to_ptr.hbm [resolvable:$true] %s17
      %s19 = sshll.u32 [#allocation2], 4
      %s20 = int_to_ptr.vmem [resolvable:$true] %s19
      %25 = dma.hbm_to_vmem [thread:$0]  %s18, 256, %s20, [#allocation3], 128, 128, 8
    $region5: #{tpu_custom_call.1} parent=1 // pred_fallthru
      _
    // Predicated region
    $region6: #{tpu_custom_call.1} parent=1 // pred_check
      _
    $region7: #{tpu_custom_call.1} parent=1 // pred_check_branch
      %27 = sbr.rel (0) target = $region9
    $region8: #{tpu_custom_call.1} parent=1 // pred_region
      %29 = vsyncadd [#allocation6], 0
      %s31 = sshll.u32 %s1, 4
      %s32 = int_to_ptr.hbm [resolvable:$true] %s31
      %s33 = sshll.u32 [#allocation5], 4
      %s34 = int_to_ptr.vmem [resolvable:$true] %s33
      %36 = dma.hbm_to_vmem [thread:$0]  %s32, 16, %s34, [#allocation6]
    $region9: #{tpu_custom_call.1} parent=1 // pred_fallthru
      _
    // Predicated region
    $region10: #{tpu_custom_call.1} parent=1 // pred_check
      _
    $region11: #{tpu_custom_call.1} parent=1 // pred_check_branch
      %38 = sbr.rel (0) target = $region13
    $region12: #{tpu_custom_call.1} parent=1 // pred_region
      %40 = dma.done [#allocation3], 256
    $region13: #{tpu_custom_call.1} parent=1 // pred_fallthru
      _
    // Predicated region
    $region14: #{tpu_custom_call.1} parent=1 // pred_check
      _
    $region15: #{tpu_custom_call.1} parent=1 // pred_check_branch
      %42 = sbr.rel (0) target = $region17
    $region16: #{tpu_custom_call.1} parent=1 // pred_region
      %44 = dma.done [#allocation6], 16
    $region17: #{tpu_custom_call.1} parent=1 // pred_fallthru
      _
    %v45 = vld [vmem:[#allocation2] sm:$0xff]
    %v46 = vld [vmem:[#allocation2 + $0x8] sm:$0xff]
    %v47 = vld [vmem:[#allocation5] sm:$0x1]
    %v49 = vperm.slane %v47, 0
    %v51 = vmul.f32 %v45, %v49
    %v52 = vmul.f32 %v46, %v49
    %vm53 = vcmask 261120
    %v54 = vsel %vm53, %v51, 0.0
    %55 = vadd.xlane.f32.xlu0 %v54
    %v56 = vpop.xlane.xlu0 %55
    %v57 = vsel %vm53, %v52, 0.0
    %58 = vadd.xlane.f32.xlu0 %v57
    %v59 = vpop.xlane.xlu0 %58
    %v62 = vlaneseq
    %v63 = vand.u32 %v62, 127
    %v64 = vperm.slane %v56, %v63
    %v65 = vperm.slane %v59, %v63
    %vm66 = vcmask 1041409
    %v67 = vsel %vm66, %v65, %v64
    %vm69 = vcmask 58368
    %v70 = vsel %vm69, %v67, -inf
    %71 = vmax.xlane.f32.xlu0 %v70
    %v72 = vpop.xlane.xlu0 %71
    %v74 = vperm.slane %v72, 0
    %v75 = vperm.slane %v72, 1
    %v78 = vsub.f32 %v56, %v74
    %v79 = vsub.f32 %v59, %v75
    %v80 = vmul.f32 %v78, 1.442695
    %v81 = vpow.pop %v80
    %v82 = vmul.f32 %v79, 1.442695
    %v83 = vpow.pop %v82
    %86 = vset.pattern.permute.xlu0 0
    %87 = vperm.xlu0 %86, %v81
    %v88 = vpop.permute.xlu0 %87
    %89 = vset.pattern.permute.xlu0 0
    %90 = vperm.xlu0 %89, %v83
    %v91 = vpop.permute.xlu0 %90
    %v92 = vperm.slane %v88, %v63
    %v93 = vperm.slane %v91, %v63
    %v94 = vsel %vm66, %v93, %v92
    %v96 = vsel %vm69, %v94, 0.0
    %97 = vadd.xlane.f32.xlu0 %v96
    %v98 = vpop.xlane.xlu0 %97
    %v99 = vrcp.pop %v98
    %v101 = vperm.slane %v99, 0
    %v102 = vperm.slane %v99, 1
    %v105 = vmul.f32 %v81, %v101
    %v106 = vmul.f32 %v83, %v102
    %108 = vset.pattern.permute.xlu0 0
    %109 = vperm.xlu0 %108, %v105
    %v110 = vpop.permute.xlu0 %109
    %113 = vset.pattern.permute.xlu0 0
    %114 = vperm.xlu0 %113, %v106
    %v115 = vpop.permute.xlu0 %114
    %v117 = vmul.f32 %v45, %v110
    %v118 = vmul.f32 %v46, %v115
    %v119 = vsel %vm53, %v117, 0.0
    %v120 = vrot.slane %v119, 4
    %v121 = vadd.f32 %v119, %v120
    %v122 = vrot.slane %v121, 2
    %v123 = vadd.f32 %v121, %v122
    %v124 = vrot.slane %v123, 1
    %v125 = vadd.f32 %v123, %v124
    %v126 = vsel %vm53, %v118, 0.0
    %v127 = vrot.slane %v126, 4
    %v128 = vadd.f32 %v126, %v127
    %v129 = vrot.slane %v128, 2
    %v130 = vadd.f32 %v128, %v129
    %v131 = vrot.slane %v130, 1
    %v132 = vadd.f32 %v130, %v131
    %v135 = vsel %vm66, %v132, %v125
    %vm137 = vcmask 254976
    %138 = vst.msk [vmem:[#allocation7] sm:$0x3] %vm137, %v135
    %v139 = vperm.slane %v110, %v63
    %v140 = vperm.slane %v115, %v63
    %v141 = vsel %vm66, %v140, %v139
    %143 = vst.msk [vmem:[#allocation8] sm:$0x3] %vm69, %v141
    // Predicated region
    $region18: #{tpu_custom_call.1} parent=1 // pred_check
      _
    $region19: #{tpu_custom_call.1} parent=1 // pred_check_branch
      %145 = sbr.rel (0) target = $region21
    $region20: #{tpu_custom_call.1} parent=1 // pred_region
      %147 = vsyncadd [#allocation4], 0
      %s149 = sshll.u32 [#allocation7], 4
      %s150 = int_to_ptr.vmem [resolvable:$true] %s149
      %s151 = sshll.u32 %s2, 4
      %s152 = int_to_ptr.hbm [resolvable:$true] %s151
      %154 = dma.vmem_to_hbm [thread:$0]  %s150, 32, %s152, [#allocation4]
    $region21: #{tpu_custom_call.1} parent=1 // pred_fallthru
      _
    // Predicated region
    $region22: #{tpu_custom_call.1} parent=1 // pred_check
      _
    $region23: #{tpu_custom_call.1} parent=1 // pred_check_branch
      %156 = sbr.rel (0) target = $region25
    $region24: #{tpu_custom_call.1} parent=1 // pred_region
      %158 = vsyncadd [#allocation9], 0
      %s160 = sshll.u32 [#allocation8], 4
      %s161 = int_to_ptr.vmem [resolvable:$true] %s160
      %s162 = sshll.u32 %s3, 4
      %s163 = int_to_ptr.hbm [resolvable:$true] %s162
      %165 = dma.vmem_to_hbm [thread:$0]  %s161, 32, %s163, [#allocation9]
    $region25: #{tpu_custom_call.1} parent=1 // pred_fallthru
      _
    // Predicated region
    $region26: #{tpu_custom_call.1} parent=1 // pred_check
      _
    $region27: #{tpu_custom_call.1} parent=1 // pred_check_branch
      %167 = sbr.rel (0) target = $region29
    $region28: #{tpu_custom_call.1} parent=1 // pred_region
      %169 = dma.done [#allocation4], 32
    $region29: #{tpu_custom_call.1} parent=1 // pred_fallthru
      _
    // Predicated region
    $region30: #{tpu_custom_call.1} parent=1 // pred_check
      _
    $region31: #{tpu_custom_call.1} parent=1 // pred_check_branch
      %171 = sbr.rel (0) target = $region33
    $region32: #{tpu_custom_call.1} parent=1 // pred_region
      %173 = dma.done [#allocation9], 32
    $region33: #{tpu_custom_call.1} parent=1 // pred_fallthru
      _
    %174 = vsyncpa [#allocation3], 1
    %175 = vsyncpa [#allocation6], 1
    %176 = vsyncpa [#allocation4], 1
    %177 = vsyncpa [#allocation9], 1

</llo_original>
